<compile_context>
chip_gen: v6e
topology: v6e:2x2x1
jax: 0.10.0
libtpu: 0.0.40
codegen_flags: <defaults>
</compile_context>

<pallas_src>
import jax
import jax.numpy as jnp
from jax.experimental import pallas as pl
from jax.experimental.pallas import tpu as pltpu


def _make_fused_kernel(numeric_size, num_categories, table_offsets):
    NUM = numeric_size
    C = num_categories

    def kernel(cat5_ref, cat_ref, num_ref, b2_ref, w_ref, emb_ref, o_ref):
        # ---- linear1, numeric part: scalar-broadcast MACs on the VPU (no MXU op). -------
        h = num_ref[0] * w_ref[0:1, :]
        for k in range(1, NUM):                                    # static unroll (NUM=8)
            h = h + num_ref[k] * w_ref[k:k + 1, :]

        # ---- linear1, categorical part: pre-folded (embed @ W1-slice) row gathers -------
        # from a single VMEM slab; base offsets are compile-time constants.
        h = h + emb_ref[table_offsets[0] + cat5_ref[0]]             # (1, 128)
        for i in range(C):                                          # static unroll (C=3)
            h = h + emb_ref[table_offsets[1 + i] + cat_ref[i]]      # (1, 128)

        # ---- bias + ReLU (VPU). ----------------------------------------------------------
        h = jnp.maximum(h + w_ref[NUM:NUM + 1, :], 0.0)

        # ---- linear2 as VPU multiply + XLU lane reduce (no (1,128)@(128,1) MXU op). ------
        out = jnp.sum(h * w_ref[NUM + 1:NUM + 2, :], axis=-1, keepdims=True) + b2_ref[0]

        # ---- exact sigmoid via a single EUP tanh. -----------------------------------------
        o_ref[...] = 0.5 * (jnp.tanh(0.5 * out) + 1.0)

    return kernel


def fused_forward(numeric_data, cat_data, cat5_data,
                  w_slab, emb_slab, b2, table_offsets):
    """Single-launch fused forward pass. Returns a (1, 1) f32 sigmoid output."""
    numeric_size = numeric_data.shape[-1]
    num_categories = cat_data.shape[-1]
    kernel = _make_fused_kernel(numeric_size, num_categories, table_offsets)

    smem = pl.BlockSpec(memory_space=pltpu.MemorySpace.SMEM)
    vmem = pl.BlockSpec(memory_space=pltpu.MemorySpace.VMEM)

    return pl.pallas_call(
        kernel,
        out_shape=jax.ShapeDtypeStruct((1, 1), jnp.float32),
        in_specs=[smem,   # cat5 index   (1,)   int32
                  smem,   # cat indices  (C,)   int32
                  smem,   # numeric data (NUM,) f32
                  smem,   # b2           (1,)   f32
                  vmem,   # weight slab  (NUM+2, 128)      f32
                  vmem],  # fused-embedding slab (R,1,128) f32
        out_specs=pl.BlockSpec(memory_space=pltpu.MemorySpace.VMEM),
    )(cat5_data.reshape(-1).astype(jnp.int32),
      cat_data.reshape(-1).astype(jnp.int32),
      numeric_data.reshape(-1).astype(jnp.float32),
      b2.reshape(-1).astype(jnp.float32),
      w_slab, emb_slab)


class CustomModelPallas:
    """JAX/Pallas re-implementation of the PyTorch CustomModel forward pass.

    Parameters are kept in their PyTorch-equivalent form (for the pure-JAX reference) and in
    a pre-fused/packed form consumed by the kernel:
        fused_table_i = embedding_table_i @ W1[rows for source i]
    stacked into one (total_rows, 1, 128) slab, plus a (numeric_size+2, 128) weight slab
    holding [W1_numeric_rows ; b1 ; w2].  Mathematically identical to embed->concat->linear1.
    """

    HIDDEN = 128

    def __init__(self, numeric_size, vocab_size, embedding_dim, num_categories,
                 category_sizes, key):
        assert num_categories == len(category_sizes)
        self.numeric_size = numeric_size
        self.embedding_dim = embedding_dim
        self.num_categories = num_categories

        keys = jax.random.split(key, 1 + num_categories + 4)
        # Embedding tables.
        self.emb_cat5 = jax.random.normal(
            keys[0], (vocab_size, embedding_dim), jnp.float32) * 0.02
        self.emb_cat = [
            jax.random.normal(keys[1 + i], (size, embedding_dim), jnp.float32) * 0.02
            for i, size in enumerate(category_sizes)
        ]

        in_features = numeric_size + embedding_dim * (1 + num_categories)
        hidden = self.HIDDEN
        # Linear weights stored as [in, out] so the math is x @ W + b
        # (transposed vs. nn.Linear's [out, in] / x @ W.T convention).
        self.w1 = jax.random.normal(
            keys[-4], (in_features, hidden), jnp.float32) / jnp.sqrt(in_features)
        self.b1 = jax.random.normal(keys[-3], (1, hidden), jnp.float32) * 0.01
        self.w2_row = jax.random.normal(
            keys[-2], (1, hidden), jnp.float32) / jnp.sqrt(hidden)   # linear2 weight row
        self.b2 = jax.random.normal(keys[-1], (1, 1), jnp.float32) * 0.01

        # --- pre-fold the embedding tables into W1 and pack the slabs (offline, once) ----
        E, C = embedding_dim, num_categories
        w1_cat5 = self.w1[0:E]                                        # (E, 128)
        w1_cats = [self.w1[E * (1 + i):E * (2 + i)] for i in range(C)]
        w1_num = self.w1[E * (1 + C):]                                # (numeric_size, 128)

        fused_rows = [self.emb_cat5 @ w1_cat5] + \
                     [self.emb_cat[i] @ w1_cats[i] for i in range(C)]
        sizes = [t.shape[0] for t in fused_rows]
        offsets = [0]
        for s in sizes[:-1]:
            offsets.append(offsets[-1] + s)
        self.table_offsets = tuple(offsets)

        # Single fused-embedding slab: leading axis is the gather axis; the trailing (1,128)
        # slab is a lane-dense tile, so an in-kernel ref[idx] is a plain leading-axis load.
        # (Row padding to (8,128) tiles is the accepted trade for a cheap tile-granular gather.)
        self.emb_slab = jnp.concatenate(fused_rows, axis=0)[:, None, :]   # (R, 1, 128)

        # Single weight slab: rows 0..NUM-1 = W1 numeric rows, row NUM = b1, row NUM+1 = w2.
        self.w_slab = jnp.concatenate([w1_num, self.b1, self.w2_row], axis=0)

    def __call__(self, numeric_data, cat_data, cat5_data):
        return fused_forward(numeric_data, cat_data, cat5_data,
                             self.w_slab, self.emb_slab, self.b2, self.table_offsets)

    def reference(self, numeric_data, cat_data, cat5_data):
        """Pure-JAX, unfused reference — mirrors the PyTorch forward exactly."""
        cat5_embed = self.emb_cat5[cat5_data].reshape(1, -1)
        cat_embeds = [self.emb_cat[i][cat_data[:, i]]
                      for i in range(self.num_categories)]
        x = jnp.concatenate([cat5_embed] + cat_embeds + [numeric_data], axis=-1)
        h = jax.nn.relu(x @ self.w1 + self.b1)
        out = h @ self.w2_row.T + self.b2
        return jax.nn.sigmoid(out)


if __name__ == "__main__":
    # Small, forward-consistent shapes.
    numeric_size = 8
    vocab_size = 32
    embedding_dim = 16
    category_sizes = [5, 7, 9]
    num_categories = len(category_sizes)

    key = jax.random.PRNGKey(0)
    k_model, k_num, k_cat, k_cat5 = jax.random.split(key, 4)

    model = CustomModelPallas(numeric_size, vocab_size, embedding_dim,
                              num_categories, category_sizes, k_model)

    numeric_data = jax.random.normal(k_num, (1, numeric_size), jnp.float32)
    cat_data = jnp.stack(
        [jax.random.randint(jax.random.fold_in(k_cat, i), (1,), 0, s)
         for i, s in enumerate(category_sizes)], axis=1).astype(jnp.int32)   # (1, 3)
    cat5_data = jax.random.randint(k_cat5, (1,), 0, vocab_size).astype(jnp.int32)  # (1,)

    out = model(numeric_data, cat_data, cat5_data)
    out = jax.block_until_ready(out)

    ref = model.reference(numeric_data, cat_data, cat5_data)
    assert out.shape == (1, 1)
    assert bool(jnp.all((out >= 0.0) & (out <= 1.0)))
    # Exact (tanh-based) sigmoid lets the tolerance tighten 40x vs. the previous version;
    # remaining slack covers f32 reassociation from the offline pre-fold / MAC ordering.
    assert bool(jnp.allclose(out, ref, atol=5e-5)), (out, ref)
    print("KERNEL_OK")
</pallas_src>

<mosaic_0001>
module attributes {stable_mosaic.version = 11 : i64} {
  func.func @kernel(%arg0: memref<1xi32, #tpu.memory_space<smem>>, %arg1: memref<3xi32, #tpu.memory_space<smem>>, %arg2: memref<8xf32, #tpu.memory_space<smem>>, %arg3: memref<1xf32, #tpu.memory_space<smem>>, %arg4: memref<10x128xf32, #tpu.memory_space<vmem>>, %arg5: memref<53x1x128xf32, #tpu.memory_space<vmem>>, %arg6: memref<1x1xf32, #tpu.memory_space<vmem>>) attributes {dimension_semantics = [], scalar_prefetch = 0 : i64, scratch_operands = 0 : i64, tpu.core_type = #tpu.core_type<tc>} {
    %c0 = arith.constant 0 : index
    %0 = memref.load %arg2[%c0] : memref<8xf32, #tpu.memory_space<smem>>
    %c0_0 = arith.constant 0 : index
    %c0_1 = arith.constant 0 : index
    %1 = vector.load %arg4[%c0_0, %c0_1] : memref<10x128xf32, #tpu.memory_space<vmem>>, vector<1x128xf32>
    %2 = vector.broadcast %0 : f32 to vector<1x128xf32>
    %3 = arith.mulf %2, %1 : vector<1x128xf32>
    %c1 = arith.constant 1 : index
    %4 = memref.load %arg2[%c1] : memref<8xf32, #tpu.memory_space<smem>>
    %c1_2 = arith.constant 1 : index
    %c0_3 = arith.constant 0 : index
    %5 = vector.load %arg4[%c1_2, %c0_3] : memref<10x128xf32, #tpu.memory_space<vmem>>, vector<1x128xf32>
    %6 = vector.broadcast %4 : f32 to vector<1x128xf32>
    %7 = arith.mulf %6, %5 : vector<1x128xf32>
    %8 = arith.addf %3, %7 : vector<1x128xf32>
    %c2 = arith.constant 2 : index
    %9 = memref.load %arg2[%c2] : memref<8xf32, #tpu.memory_space<smem>>
    %c2_4 = arith.constant 2 : index
    %c0_5 = arith.constant 0 : index
    %10 = vector.load %arg4[%c2_4, %c0_5] : memref<10x128xf32, #tpu.memory_space<vmem>>, vector<1x128xf32>
    %11 = vector.broadcast %9 : f32 to vector<1x128xf32>
    %12 = arith.mulf %11, %10 : vector<1x128xf32>
    %13 = arith.addf %8, %12 : vector<1x128xf32>
    %c3 = arith.constant 3 : index
    %14 = memref.load %arg2[%c3] : memref<8xf32, #tpu.memory_space<smem>>
    %c3_6 = arith.constant 3 : index
    %c0_7 = arith.constant 0 : index
    %15 = vector.load %arg4[%c3_6, %c0_7] : memref<10x128xf32, #tpu.memory_space<vmem>>, vector<1x128xf32>
    %16 = vector.broadcast %14 : f32 to vector<1x128xf32>
    %17 = arith.mulf %16, %15 : vector<1x128xf32>
    %18 = arith.addf %13, %17 : vector<1x128xf32>
    %c4 = arith.constant 4 : index
    %19 = memref.load %arg2[%c4] : memref<8xf32, #tpu.memory_space<smem>>
    %c4_8 = arith.constant 4 : index
    %c0_9 = arith.constant 0 : index
    %20 = vector.load %arg4[%c4_8, %c0_9] : memref<10x128xf32, #tpu.memory_space<vmem>>, vector<1x128xf32>
    %21 = vector.broadcast %19 : f32 to vector<1x128xf32>
    %22 = arith.mulf %21, %20 : vector<1x128xf32>
    %23 = arith.addf %18, %22 : vector<1x128xf32>
    %c5 = arith.constant 5 : index
    %24 = memref.load %arg2[%c5] : memref<8xf32, #tpu.memory_space<smem>>
    %c5_10 = arith.constant 5 : index
    %c0_11 = arith.constant 0 : index
    %25 = vector.load %arg4[%c5_10, %c0_11] : memref<10x128xf32, #tpu.memory_space<vmem>>, vector<1x128xf32>
    %26 = vector.broadcast %24 : f32 to vector<1x128xf32>
    %27 = arith.mulf %26, %25 : vector<1x128xf32>
    %28 = arith.addf %23, %27 : vector<1x128xf32>
    %c6 = arith.constant 6 : index
    %29 = memref.load %arg2[%c6] : memref<8xf32, #tpu.memory_space<smem>>
    %c6_12 = arith.constant 6 : index
    %c0_13 = arith.constant 0 : index
    %30 = vector.load %arg4[%c6_12, %c0_13] : memref<10x128xf32, #tpu.memory_space<vmem>>, vector<1x128xf32>
    %31 = vector.broadcast %29 : f32 to vector<1x128xf32>
    %32 = arith.mulf %31, %30 : vector<1x128xf32>
    %33 = arith.addf %28, %32 : vector<1x128xf32>
    %c7 = arith.constant 7 : index
    %34 = memref.load %arg2[%c7] : memref<8xf32, #tpu.memory_space<smem>>
    %c7_14 = arith.constant 7 : index
    %c0_15 = arith.constant 0 : index
    %35 = vector.load %arg4[%c7_14, %c0_15] : memref<10x128xf32, #tpu.memory_space<vmem>>, vector<1x128xf32>
    %36 = vector.broadcast %34 : f32 to vector<1x128xf32>
    %37 = arith.mulf %36, %35 : vector<1x128xf32>
    %38 = arith.addf %33, %37 : vector<1x128xf32>
    %c0_16 = arith.constant 0 : index
    %39 = memref.load %arg0[%c0_16] : memref<1xi32, #tpu.memory_space<smem>>
    %c0_i32 = arith.constant 0 : i32
    %40 = arith.addi %c0_i32, %39 : i32
    %41 = arith.index_cast %40 : i32 to index
    %c0_17 = arith.constant 0 : index
    %c0_18 = arith.constant 0 : index
    %42 = vector.load %arg5[%41, %c0_17, %c0_18] : memref<53x1x128xf32, #tpu.memory_space<vmem>>, vector<1x1x128xf32>
    %43 = vector.shape_cast %42 : vector<1x1x128xf32> to vector<1x128xf32>
    %44 = arith.addf %38, %43 : vector<1x128xf32>
    %c0_19 = arith.constant 0 : index
    %45 = memref.load %arg1[%c0_19] : memref<3xi32, #tpu.memory_space<smem>>
    %c32_i32 = arith.constant 32 : i32
    %46 = arith.addi %c32_i32, %45 : i32
    %47 = arith.index_cast %46 : i32 to index
    %c0_20 = arith.constant 0 : index
    %c0_21 = arith.constant 0 : index
    %48 = vector.load %arg5[%47, %c0_20, %c0_21] : memref<53x1x128xf32, #tpu.memory_space<vmem>>, vector<1x1x128xf32>
    %49 = vector.shape_cast %48 : vector<1x1x128xf32> to vector<1x128xf32>
    %50 = arith.addf %44, %49 : vector<1x128xf32>
    %c1_22 = arith.constant 1 : index
    %51 = memref.load %arg1[%c1_22] : memref<3xi32, #tpu.memory_space<smem>>
    %c37_i32 = arith.constant 37 : i32
    %52 = arith.addi %c37_i32, %51 : i32
    %53 = arith.index_cast %52 : i32 to index
    %c0_23 = arith.constant 0 : index
    %c0_24 = arith.constant 0 : index
    %54 = vector.load %arg5[%53, %c0_23, %c0_24] : memref<53x1x128xf32, #tpu.memory_space<vmem>>, vector<1x1x128xf32>
    %55 = vector.shape_cast %54 : vector<1x1x128xf32> to vector<1x128xf32>
    %56 = arith.addf %50, %55 : vector<1x128xf32>
    %c2_25 = arith.constant 2 : index
    %57 = memref.load %arg1[%c2_25] : memref<3xi32, #tpu.memory_space<smem>>
    %c44_i32 = arith.constant 44 : i32
    %58 = arith.addi %c44_i32, %57 : i32
    %59 = arith.index_cast %58 : i32 to index
    %c0_26 = arith.constant 0 : index
    %c0_27 = arith.constant 0 : index
    %60 = vector.load %arg5[%59, %c0_26, %c0_27] : memref<53x1x128xf32, #tpu.memory_space<vmem>>, vector<1x1x128xf32>
    %61 = vector.shape_cast %60 : vector<1x1x128xf32> to vector<1x128xf32>
    %62 = arith.addf %56, %61 : vector<1x128xf32>
    %c8 = arith.constant 8 : index
    %c0_28 = arith.constant 0 : index
    %63 = vector.load %arg4[%c8, %c0_28] : memref<10x128xf32, #tpu.memory_space<vmem>>, vector<1x128xf32>
    %64 = arith.addf %62, %63 : vector<1x128xf32>
    %cst = arith.constant 0.000000e+00 : f32
    %65 = vector.broadcast %cst : f32 to vector<1x128xf32>
    %66 = arith.maximumf %64, %65 : vector<1x128xf32>
    %c9 = arith.constant 9 : index
    %c0_29 = arith.constant 0 : index
    %67 = vector.load %arg4[%c9, %c0_29] : memref<10x128xf32, #tpu.memory_space<vmem>>, vector<1x128xf32>
    %68 = arith.mulf %66, %67 : vector<1x128xf32>
    %cst_30 = arith.constant dense<0.000000e+00> : vector<1xf32>
    %69 = vector.multi_reduction <add>, %68, %cst_30 [1] : vector<1x128xf32> to vector<1xf32>
    %70 = vector.shape_cast %69 : vector<1xf32> to vector<1x1xf32>
    %c0_31 = arith.constant 0 : index
    %71 = memref.load %arg3[%c0_31] : memref<1xf32, #tpu.memory_space<smem>>
    %72 = vector.broadcast %71 : f32 to vector<1x1xf32>
    %73 = arith.addf %70, %72 : vector<1x1xf32>
    %cst_32 = arith.constant 5.000000e-01 : f32
    %74 = vector.broadcast %cst_32 : f32 to vector<1x1xf32>
    %75 = arith.mulf %74, %73 : vector<1x1xf32>
    %76 = math.tanh %75 : vector<1x1xf32>
    %cst_33 = arith.constant 1.000000e+00 : f32
    %77 = vector.broadcast %cst_33 : f32 to vector<1x1xf32>
    %78 = arith.addf %76, %77 : vector<1x1xf32>
    %cst_34 = arith.constant 5.000000e-01 : f32
    %79 = vector.broadcast %cst_34 : f32 to vector<1x1xf32>
    %80 = arith.mulf %79, %78 : vector<1x1xf32>
    %c0_35 = arith.constant 0 : index
    %c0_36 = arith.constant 0 : index
    %81 = vector.load %arg6[%c0_35, %c0_36] : memref<1x1xf32, #tpu.memory_space<vmem>>, vector<1x1xf32>
    tpu.vector_store %arg6[%c0_35, %c0_36], %80 {strides = array<i32>} : memref<1x1xf32, #tpu.memory_space<vmem>>, vector<1x1xf32>,
    return
  }
}

</mosaic_0001>

<llo_original>
// kernel: tpu_custom_call.1
$region0: #{tpu_custom_call.1}
  #allocation0 [shape = 'u32[]', space=smem, size = 0x4, offset = 0x4, fixed_abs, tag = 'smem constant byte address 0x4 - core index']
  #allocation1 [shape = 'u32[144,128]{1,0:T(1,128)}', space=vmem, size = 0x12000, scoped, tag = 'internal scratch']
  #allocation2 [shape = 's32[1]{0:T(128)S(6)}', space=smem, size = 0x200, scoped, tag = 'scoped memory for tpu_custom_call.1']
  #allocation3 [shape = 'f32[1]{0:T(128)S(6)}', space=smem, size = 0x200, scoped, tag = 'scoped memory for tpu_custom_call.1']
  %s0 = inlined_call_operand.<no memory space> [shape: s32[1], index: 0, kind: input, shape index: {}]
  %s1 = inlined_call_operand.vmem [shape: s32[3], index: 1, kind: input, shape index: {}]
  %s2 = inlined_call_operand.vmem [shape: f32[8], index: 2, kind: input, shape index: {}]
  %s3 = inlined_call_operand.<no memory space> [shape: f32[1], index: 3, kind: input, shape index: {}]
  %s4 = inlined_call_operand.hbm [shape: f32[10,128], index: 4, kind: input, shape index: {}]
  %s5 = inlined_call_operand.hbm [shape: f32[53,1,128], index: 5, kind: input, shape index: {}]
  %s6 = inlined_call_operand.hbm [shape: f32[1,1], index: 6, kind: output, shape index: {}]
  %s7 = sld [smem:[#allocation0]]
  $region50: #{tpu_custom_call.1} parent=0
    _
  %s9 = ssub.s32 1, %s7
  %s10 = scalar_select 0, %s9, %s7
  %11 = sst [smem:[#allocation2]] %s0
  %12 = sst [smem:[#allocation3]] %s3
  $region1: #{tpu_custom_call.1} parent=0
    #allocation4 [shape = 'u8[512]{0}', space=smem, size = 0x200, scoped, tag = 'input window, operand 1, single buffered']
    #allocation5 [shape = 's32[1]{0}', space=sflag, size = 0x4, scoped, tag = 'scoped memory for tpu_custom_call.1']
    #allocation6 [shape = 's32[1]{0}', space=sflag, size = 0x4, scoped, tag = 'scoped memory for tpu_custom_call.1']
    #allocation7 [shape = 's32[1]{0}', space=sflag, size = 0x4, scoped, tag = 'scoped memory for tpu_custom_call.1']
    #allocation8 [shape = 'u8[512]{0}', space=smem, size = 0x200, scoped, tag = 'input window, operand 2, single buffered']
    #allocation9 [shape = 's32[1]{0}', space=sflag, size = 0x4, scoped, tag = 'scoped memory for tpu_custom_call.1']
    #allocation10 [shape = 'u8[8192]{0}', space=vmem, size = 0x2000, scoped, tag = 'input window, operand 4, single buffered']
    #allocation11 [shape = 'u8[27136]{0}', space=vmem, size = 0x6c00, scoped, tag = 'input window, operand 5, single buffered']
    #allocation12 [shape = 's32[1]{0}', space=sflag, size = 0x4, scoped, tag = 'scoped memory for tpu_custom_call.1']
    #allocation13 [shape = 'u8[512]{0}', space=vmem, size = 0x400, scoped, tag = 'output window, operand 0, single buffered']
    %13 = vsyncpa [#allocation7], 0
    %14 = vsyncpa [#allocation9], 0
    %15 = vsyncpa [#allocation5], 0
    %16 = vsyncpa [#allocation12], 0
    %17 = vsyncpa [#allocation6], 0
    // Predicated region
    $region2: #{tpu_custom_call.1} parent=1 // pred_check
      _
    $region3: #{tpu_custom_call.1} parent=1 // pred_check_branch
      %19 = sbr.rel (0) target = $region5
    $region4: #{tpu_custom_call.1} parent=1 // pred_region
      _
    $region5: #{tpu_custom_call.1} parent=1 // pred_fallthru
      _
    // Predicated region
    $region6: #{tpu_custom_call.1} parent=1 // pred_check
      _
    $region7: #{tpu_custom_call.1} parent=1 // pred_check_branch
      %21 = sbr.rel (0) target = $region9
    $region8: #{tpu_custom_call.1} parent=1 // pred_region
      %s23 = ssub.s32 16, 16
      %24 = vsyncadd [#allocation7], %s23
      %s26 = sshll.u32 %s1, 4
      %s27 = int_to_ptr.vmem [resolvable:$true] %s26
      %29 = dma.vmem_to_smem %s27, 16, [#allocation4], [#allocation7]
    $region9: #{tpu_custom_call.1} parent=1 // pred_fallthru
      _
    // Predicated region
    $region10: #{tpu_custom_call.1} parent=1 // pred_check
      _
    $region11: #{tpu_custom_call.1} parent=1 // pred_check_branch
      %31 = sbr.rel (0) target = $region13
    $region12: #{tpu_custom_call.1} parent=1 // pred_region
      %s33 = ssub.s32 16, 16
      %34 = vsyncadd [#allocation9], %s33
      %s36 = sshll.u32 %s2, 4
      %s37 = int_to_ptr.vmem [resolvable:$true] %s36
      %39 = dma.vmem_to_smem %s37, 16, [#allocation8], [#allocation9]
    $region13: #{tpu_custom_call.1} parent=1 // pred_fallthru
      _
    // Predicated region
    $region14: #{tpu_custom_call.1} parent=1 // pred_check
      _
    $region15: #{tpu_custom_call.1} parent=1 // pred_check_branch
      %41 = sbr.rel (0) target = $region17
    $region16: #{tpu_custom_call.1} parent=1 // pred_region
      _
    $region17: #{tpu_custom_call.1} parent=1 // pred_fallthru
      _
    // Predicated region
    $region18: #{tpu_custom_call.1} parent=1 // pred_check
      _
    $region19: #{tpu_custom_call.1} parent=1 // pred_check_branch
      %43 = sbr.rel (0) target = $region21
    $region20: #{tpu_custom_call.1} parent=1 // pred_region
      %s45 = ssub.s32 256, 256
      %46 = vsyncadd [#allocation5], %s45
      %s47 = sshll.u32 [#allocation10], 4
      %s48 = int_to_ptr.vmem [resolvable:$true] %s47
      %53 = dma.hbm_to_vmem [thread:$0]  %s4, 256, %s48, [#allocation5], 128, 128, 8
    $region21: #{tpu_custom_call.1} parent=1 // pred_fallthru
      _
    // Predicated region
    $region22: #{tpu_custom_call.1} parent=1 // pred_check
      _
    $region23: #{tpu_custom_call.1} parent=1 // pred_check_branch
      %55 = sbr.rel (0) target = $region25
    $region24: #{tpu_custom_call.1} parent=1 // pred_region
      %s57 = ssub.s32 848, 848
      %58 = vsyncadd [#allocation12], %s57
      %s59 = sshll.u32 [#allocation11], 4
      %s60 = int_to_ptr.vmem [resolvable:$true] %s59
      %65 = dma.hbm_to_vmem [thread:$0]  %s5, 848, %s60, [#allocation12], 16, 16, 1
    $region25: #{tpu_custom_call.1} parent=1 // pred_fallthru
      _
    // Predicated region
    $region26: #{tpu_custom_call.1} parent=1 // pred_check
      _
    $region27: #{tpu_custom_call.1} parent=1 // pred_check_branch
      %67 = sbr.rel (0) target = $region29
    $region28: #{tpu_custom_call.1} parent=1 // pred_region
      %68 = dma.done [#allocation7], 16
    $region29: #{tpu_custom_call.1} parent=1 // pred_fallthru
      _
    // Predicated region
    $region30: #{tpu_custom_call.1} parent=1 // pred_check
      _
    $region31: #{tpu_custom_call.1} parent=1 // pred_check_branch
      %70 = sbr.rel (0) target = $region33
    $region32: #{tpu_custom_call.1} parent=1 // pred_region
      %71 = dma.done [#allocation9], 16
    $region33: #{tpu_custom_call.1} parent=1 // pred_fallthru
      _
    // Predicated region
    $region34: #{tpu_custom_call.1} parent=1 // pred_check
      _
    $region35: #{tpu_custom_call.1} parent=1 // pred_check_branch
      %73 = sbr.rel (0) target = $region37
    $region36: #{tpu_custom_call.1} parent=1 // pred_region
      %74 = dma.done [#allocation5], 256
    $region37: #{tpu_custom_call.1} parent=1 // pred_fallthru
      _
    // Predicated region
    $region38: #{tpu_custom_call.1} parent=1 // pred_check
      _
    $region39: #{tpu_custom_call.1} parent=1 // pred_check_branch
      %76 = sbr.rel (0) target = $region41
    $region40: #{tpu_custom_call.1} parent=1 // pred_region
      %77 = dma.done [#allocation12], 848
    $region41: #{tpu_custom_call.1} parent=1 // pred_fallthru
      _
    %78 = sfence
    %s79 = sld [smem:[#allocation8]]
    %v80 = vld [vmem:[#allocation10] sm:$0x1]
    %v81 = vstv %s79
    %v82 = vmul.f32 %v81, %v80
    %s83 = sld [smem:[#allocation8 + $0x1]]
    %v84 = vld [vmem:[#allocation10 + $0x1] sm:$0x1]
    %v85 = vstv %s83
    %v86 = vmul.f32 %v85, %v84
    %v87 = vadd.f32 %v82, %v86
    %s88 = sld [smem:[#allocation8 + $0x2]]
    %v89 = vld [vmem:[#allocation10 + $0x2] sm:$0x1]
    %v90 = vstv %s88
    %v91 = vmul.f32 %v90, %v89
    %v92 = vadd.f32 %v87, %v91
    %s93 = sld [smem:[#allocation8 + $0x3]]
    %v94 = vld [vmem:[#allocation10 + $0x3] sm:$0x1]
    %v95 = vstv %s93
    %v96 = vmul.f32 %v95, %v94
    %v97 = vadd.f32 %v92, %v96
    %s98 = sld [smem:[#allocation8 + $0x4]]
    %v99 = vld [vmem:[#allocation10 + $0x4] sm:$0x1]
    %v100 = vstv %s98
    %v101 = vmul.f32 %v100, %v99
    %v102 = vadd.f32 %v97, %v101
    %s103 = sld [smem:[#allocation8 + $0x5]]
    %v104 = vld [vmem:[#allocation10 + $0x5] sm:$0x1]
    %v105 = vstv %s103
    %v106 = vmul.f32 %v105, %v104
    %v107 = vadd.f32 %v102, %v106
    %s108 = sld [smem:[#allocation8 + $0x6]]
    %v109 = vld [vmem:[#allocation10 + $0x6] sm:$0x1]
    %v110 = vstv %s108
    %v111 = vmul.f32 %v110, %v109
    %v112 = vadd.f32 %v107, %v111
    %s113 = sld [smem:[#allocation8 + $0x7]]
    %v114 = vld [vmem:[#allocation10 + $0x7] sm:$0x1]
    %v115 = vstv %s113
    %v116 = vmul.f32 %v115, %v114
    %v117 = vadd.f32 %v112, %v116
    %s118 = sld [smem:[#allocation2]]
    %s119 = scalar_lea.vmem [#allocation11], %s118
    %v120 = vld [vmem:[%s119] sm:$0x1]
    %v121 = vadd.f32 %v117, %v120
    %s122 = sld [smem:[#allocation4]]
    %s123 = sadd.s32 %s122, 32
    %s124 = scalar_lea.vmem [#allocation11], %s123
    %v125 = vld [vmem:[%s124] sm:$0x1]
    %v126 = vadd.f32 %v121, %v125
    %s127 = sld [smem:[#allocation4 + $0x1]]
    %s128 = sadd.s32 %s127, 37
    %s129 = scalar_lea.vmem [#allocation11], %s128
    %v130 = vld [vmem:[%s129] sm:$0x1]
    %v131 = vadd.f32 %v126, %v130
    %s132 = sld [smem:[#allocation4 + $0x2]]
    %s133 = sadd.s32 %s132, 44
    %s134 = scalar_lea.vmem [#allocation11], %s133
    %v135 = vld [vmem:[%s134] sm:$0x1]
    %v136 = vadd.f32 %v131, %v135
    %v137 = vld [vmem:[#allocation10 + $0x8] sm:$0x1]
    %v138 = vadd.f32 %v136, %v137
    %v139 = vmax.f32 %v138, 0.0
    %v140 = vld [vmem:[#allocation10 + $0x9] sm:$0x1]
    %v141 = vmul.f32 %v139, %v140
    %vm142 = vcmask 1040384
    %v143 = vsel %vm142, %v141, 0.0
    %144 = vadd.xlane.f32.xlu0 %v143
    %v145 = vpop.xlane.xlu0 %144
    %s146 = sld [smem:[#allocation3]]
    %v147 = vstv %s146
    %v148 = vadd.f32 %v145, %v147
    %v149 = vmul.f32 %v148, 0.5
    %v150 = vtanh.pop %v149
    %v151 = vadd.f32 %v150, 1.0
    %v152 = vmul.f32 %v151, 0.5
    %vm153 = vcmask 0
    %154 = vst.msk [vmem:[#allocation13] sm:$0x1] %vm153, %v152
    // Predicated region
    $region42: #{tpu_custom_call.1} parent=1 // pred_check
      _
    $region43: #{tpu_custom_call.1} parent=1 // pred_check_branch
      %156 = sbr.rel (0) target = $region45
    $region44: #{tpu_custom_call.1} parent=1 // pred_region
      %s158 = ssub.s32 16, 16
      %159 = vsyncadd [#allocation6], %s158
      %s161 = sshll.u32 [#allocation13], 4
      %s162 = int_to_ptr.vmem [resolvable:$true] %s161
      %164 = dma.vmem_to_hbm [thread:$0]  %s162, 16, %s6, [#allocation6]
    $region45: #{tpu_custom_call.1} parent=1 // pred_fallthru
      _
    // Predicated region
    $region46: #{tpu_custom_call.1} parent=1 // pred_check
      _
    $region47: #{tpu_custom_call.1} parent=1 // pred_check_branch
      %166 = sbr.rel (0) target = $region49
    $region48: #{tpu_custom_call.1} parent=1 // pred_region
      %167 = dma.done [#allocation6], 16
    $region49: #{tpu_custom_call.1} parent=1 // pred_fallthru
      _
    %168 = vsyncpa [#allocation5], 1
    %169 = vsyncpa [#allocation12], 1
    %170 = vsyncpa [#allocation6], 1
    %171 = vsyncpa [#allocation7], 1
    %172 = vsyncpa [#allocation9], 1

</llo_original>
